<compile_context>
chip_gen: v6e
topology: v6e:2x2x1
jax: 0.10.0
libtpu: 0.0.40
codegen_flags: <defaults>
</compile_context>

<pallas_src>
import functools
import numpy as np
import jax
import jax.numpy as jnp
from jax.experimental import pallas as pl
from jax.experimental.pallas import tpu as pltpu


# ----------------------------- fused Pallas kernel -----------------------------

def _afn_fused_kernel(high_ref, low_ref, pool_ref, wh_ref, wkv_ref, wbo_ref,
                      shift_ref, mask_ref, o_ref, *, c_t):
    f32 = jnp.float32
    bf16 = jnp.bfloat16

    high = high_ref[0]          # (Ch,  HW)    bf16, channels on sublanes, spatial on lanes
    low = low_ref[0]            # (Cl,  HWl)   bf16
    pool = pool_ref[...]        # (S_pad, HWl) bf16, zero rows beyond the real bin count

    # ---- stacked [query ; bottleneck-high] projection (BN scales + matmul_norm pre-folded) ----
    proj = jnp.dot(wh_ref[...], high, preferred_element_type=f32)     # (Ct+Cout, HW)
    proj = proj + shift_ref[...]                                       # q_shift / b_shift packed
    q = proj[:c_t]                                                     # (Ct,  HW)
    high_part = proj[c_t:]                                             # (Cout, HW), b_shift included

    # ---- PPMConcat adaptive-avg pooling of low feats (channels-first only) ----
    pooled = jax.lax.dot_general(low, pool, (((1,), (1,)), ((), ())),
                                 preferred_element_type=f32)           # (Cl, S_pad)

    # ---- stacked [key ; value] projection, channels-first (k_scale folded; k_shift cancels) ----
    kv = jnp.dot(wkv_ref[...], pooled.astype(bf16),
                 preferred_element_type=f32)                           # (2*Ct, S_pad)
    k = kv[:c_t]                                                       # (Ct, S_pad)
    v = kv[c_t:]                                                       # (Ct, S_pad)

    # ---- attention logits: contract channels (transposed-LHS matmul) ----
    sim = jax.lax.dot_general(k.astype(bf16), q.astype(bf16),
                              (((0,), (0,)), ((), ())),
                              preferred_element_type=f32)              # (S_pad, HW)
    sim = sim + mask_ref[...]                                          # -1e30 on padded key rows
    sim = sim - jnp.max(sim, axis=0, keepdims=True)
    p = jnp.exp(sim)
    p = p * pl.reciprocal(jnp.sum(p, axis=0, keepdims=True), approx=True)

    # ---- context, fused out_project + bottleneck(context half), add high half ----
    ctx = jnp.dot(v.astype(bf16), p.astype(bf16),
                  preferred_element_type=f32)                          # (Ct, HW)
    out = jnp.dot(wbo_ref[...], ctx.astype(bf16),
                  preferred_element_type=f32)                          # (Cout, HW)
    out = out + high_part

    o_ref[0] = out.astype(o_ref.dtype)


# ----------------------------- wrapper -----------------------------

def afn_block_forward(low_feats, high_feats, params):
    """low_feats: (N, C_low, Hl, Wl), high_feats: (N, C_high, Hh, Wh) -> (N, C_out, Hh, Wh)."""
    N, Cl, Hl, Wl = low_feats.shape
    _, Ch, Hh, Wh = high_feats.shape
    HWl, HWh = Hl * Wl, Hh * Wh
    Ct = int(params['c_t'])
    Cout = params['wbo'].shape[0]
    S_pad = params['pool'].shape[0]

    # NCHW -> (N, C, HW): pure reshape (channels -> sublanes, spatial -> lanes), no transpose.
    low = low_feats.reshape(N, Cl, HWl).astype(jnp.bfloat16)
    high = high_feats.reshape(N, Ch, HWh).astype(jnp.bfloat16)

    kern = functools.partial(_afn_fused_kernel, c_t=Ct)

    # advisory cost estimate for XLA scheduling
    mxu_mnk = (
        (Ct + Cout, HWh, Ch),   # stacked query / bottleneck-high projection
        (Cl, S_pad, HWl),       # PPM pooling
        (2 * Ct, S_pad, Cl),    # stacked key / value projection
        (S_pad, HWh, Ct),       # attention logits
        (Ct, HWh, S_pad),       # context
        (Cout, HWh, Ct),        # fused out_project + bottleneck(context)
    )
    flops = 2 * N * sum(m * n * k for m, n, k in mxu_mnk)
    transc = N * (S_pad * HWh + HWh)
    param_bytes = sum(int(v.size) * v.dtype.itemsize for v in params.values()
                      if isinstance(v, jax.Array))
    bytes_acc = int(low.size * 2 + high.size * 2 + param_bytes + N * Cout * HWh * 2)

    out = pl.pallas_call(
        kern,
        out_shape=jax.ShapeDtypeStruct((N, Cout, HWh), jnp.bfloat16),
        grid=(N,),
        in_specs=[
            pl.BlockSpec((1, Ch, HWh), lambda n: (n, 0, 0)),     # high
            pl.BlockSpec((1, Cl, HWl), lambda n: (n, 0, 0)),     # low
            pl.BlockSpec((S_pad, HWl), lambda n: (0, 0)),        # pool matrix (padded)
            pl.BlockSpec((Ct + Cout, Ch), lambda n: (0, 0)),     # stacked [Wq'; Wbh']
            pl.BlockSpec((2 * Ct, Cl), lambda n: (0, 0)),        # stacked [Wk'; Wv]
            pl.BlockSpec((Cout, Ct), lambda n: (0, 0)),          # Wbo = (b_scale*Wb_ctx) @ Wo
            pl.BlockSpec((Ct + Cout, 1), lambda n: (0, 0)),      # packed [q_shift'; b_shift]
            pl.BlockSpec((S_pad, 1), lambda n: (0, 0)),          # key mask bias (0 / -1e30)
        ],
        out_specs=pl.BlockSpec((1, Cout, HWh), lambda n: (n, 0, 0)),
        compiler_params=pltpu.CompilerParams(dimension_semantics=("parallel",)),
        cost_estimate=pl.CostEstimate(flops=flops, transcendentals=transc,
                                      bytes_accessed=bytes_acc),
    )(high, low, params['pool'], params['w_high'], params['w_kv'], params['wbo'],
      params['shift'], params['mask'])

    return out.reshape(N, Cout, Hh, Wh)


# ----------------------------- glue / params -----------------------------

def adaptive_pool_matrix(H, W, scales, pad_to=128):
    """PPMConcat as one matrix of shape (S_pad, H*W); pooled = P @ x_flat.
    Matches nn.AdaptiveAvgPool2d floor/ceil bins and PPMConcat concat order.
    Rows beyond the real bin count are zero padding (masked out in attention)."""
    rows = []
    for s in scales:
        for i in range(s):
            h0 = (i * H) // s
            h1 = -((-(i + 1) * H) // s)
            for j in range(s):
                w0 = (j * W) // s
                w1 = -((-(j + 1) * W) // s)
                m = np.zeros((H, W), dtype=np.float32)
                m[h0:h1, w0:w1] = 1.0 / float((h1 - h0) * (w1 - w0))
                rows.append(m.reshape(-1))
    P = np.stack(rows, axis=0)
    s_real = P.shape[0]
    s_pad = max(pad_to, -(-s_real // pad_to) * pad_to)
    P_pad = np.zeros((s_pad, H * W), dtype=np.float32)
    P_pad[:s_real] = P
    return P_pad, s_real


def _bn_fold(gamma, beta, mean, var, eps=1e-5):
    scale = gamma / jnp.sqrt(var + eps)
    shift = beta - mean * scale
    return scale, shift


def init_params(key, c_low, c_high, c_t, c_out, h_low, w_low, key_pool_scales):
    ks = jax.random.split(key, 8)
    bf16 = jnp.bfloat16
    f32 = jnp.float32

    def w(k, c_out_, c_in_):
        return 0.1 * jax.random.normal(k, (c_out_, c_in_), f32)

    def bn(k, c):
        kg, kb, km, kv = jax.random.split(k, 4)
        gamma = 1.0 + 0.1 * jax.random.normal(kg, (c,), f32)
        beta = 0.1 * jax.random.normal(kb, (c,), f32)
        mean = 0.1 * jax.random.normal(km, (c,), f32)
        var = 1.0 + 0.1 * jax.random.uniform(kv, (c,), f32)
        return _bn_fold(gamma, beta, mean, var)

    q_scale, q_shift = bn(ks[0], c_t)      # query_project: conv + BN (key_query_norm=True)
    k_scale, _k_shift = bn(ks[1], c_t)     # key_project:   conv + BN (shift cancels in softmax)
    b_scale, b_shift = bn(ks[2], c_out)    # bottleneck:    conv + BN

    wq = w(ks[3], c_t, c_high)
    wk = w(ks[4], c_t, c_low)
    wv = w(ks[5], c_t, c_low)              # value_out_norm=False -> no affine
    wo = w(ks[6], c_out, c_t)              # out_project: conv only (bias=False, no norm)
    wb = w(ks[7], c_out, c_out + c_high)   # bottleneck over cat([context, high])
    wb_ctx, wb_high = wb[:, :c_out], wb[:, c_out:]

    # --- algebraic folds (all in f32, then cast to bf16) ---
    inv_scale = float(c_t) ** -0.5                          # matmul_norm
    wq_f = (q_scale * inv_scale)[:, None] * wq              # fold q_scale + matmul_norm
    q_shift_f = q_shift * inv_scale
    wk_f = k_scale[:, None] * wk                            # fold k_scale; k_shift dropped
    wbh_f = b_scale[:, None] * wb_high                      # fold b_scale into bottleneck halves
    wbc_f = b_scale[:, None] * wb_ctx
    wbo = wbc_f @ wo                                        # fold out_project into bottleneck

    w_high = jnp.concatenate([wq_f, wbh_f], axis=0)         # (Ct+Cout, Ch)
    w_kv = jnp.concatenate([wk_f, wv], axis=0)              # (2*Ct,    Cl)
    shift = jnp.concatenate([q_shift_f, b_shift]).reshape(-1, 1)

    pool, s_real = adaptive_pool_matrix(h_low, w_low, key_pool_scales)
    mask = np.where(np.arange(pool.shape[0]) < s_real, 0.0, -1e30).astype(np.float32)

    return dict(
        w_high=jnp.asarray(w_high, bf16),
        w_kv=jnp.asarray(w_kv, bf16),
        wbo=jnp.asarray(wbo, bf16),
        shift=shift.astype(f32),
        mask=jnp.asarray(mask.reshape(-1, 1), f32),
        pool=jnp.asarray(pool, bf16),
        c_t=c_t,
    )


# ----------------------------- main -----------------------------

if __name__ == "__main__":
    key = jax.random.PRNGKey(0)
    N = 2
    C_low, C_high = 8, 8
    Ct, Cout = 16, 16
    Hh = Wh = 16
    Hl = Wl = 16
    key_pool_scales = (1, 3, 6, 8)   # S = 1 + 9 + 36 + 64 = 110 (padded to 128)

    k_low, k_high, k_param = jax.random.split(key, 3)
    low_feats = jax.random.normal(k_low, (N, C_low, Hl, Wl), jnp.float32)
    high_feats = jax.random.normal(k_high, (N, C_high, Hh, Wh), jnp.float32)

    params = init_params(k_param, C_low, C_high, Ct, Cout, Hl, Wl, key_pool_scales)

    out = afn_block_forward(low_feats, high_feats, params)
    out = jax.block_until_ready(out)
    assert out.shape == (N, Cout, Hh, Wh), out.shape
    assert bool(jnp.all(jnp.isfinite(out.astype(jnp.float32))))
    print("KERNEL_OK")
</pallas_src>

<mosaic_0001>
module attributes {stable_mosaic.version = 11 : i64} {
  func.func @_afn_fused_kernel(%arg0: i32, %arg1: memref<1x8x256xbf16, #tpu.memory_space<vmem>>, %arg2: memref<1x8x256xbf16, #tpu.memory_space<vmem>>, %arg3: memref<128x256xbf16, #tpu.memory_space<vmem>>, %arg4: memref<32x8xbf16, #tpu.memory_space<vmem>>, %arg5: memref<32x8xbf16, #tpu.memory_space<vmem>>, %arg6: memref<16x16xbf16, #tpu.memory_space<vmem>>, %arg7: memref<32x1xf32, #tpu.memory_space<vmem>>, %arg8: memref<128x1xf32, #tpu.memory_space<vmem>>, %arg9: memref<1x16x256xbf16, #tpu.memory_space<vmem>>) attributes {dimension_semantics = [#tpu.dimension_semantics<parallel>], iteration_bounds = array<i64: 2>, scalar_prefetch = 0 : i64, scratch_operands = 0 : i64, tpu.core_type = #tpu.core_type<tc>, window_params = [{transform_indices = @transform_0, window_bounds = array<i64: 1, 8, 256>}, {transform_indices = @transform_1, window_bounds = array<i64: 1, 8, 256>}, {pipeline_mode = #tpu.pipeline_mode<synchronous>, transform_indices = @transform_2, window_bounds = array<i64: 128, 256>}, {pipeline_mode = #tpu.pipeline_mode<synchronous>, transform_indices = @transform_3, window_bounds = array<i64: 32, 8>}, {pipeline_mode = #tpu.pipeline_mode<synchronous>, transform_indices = @transform_4, window_bounds = array<i64: 32, 8>}, {pipeline_mode = #tpu.pipeline_mode<synchronous>, transform_indices = @transform_5, window_bounds = array<i64: 16, 16>}, {pipeline_mode = #tpu.pipeline_mode<synchronous>, transform_indices = @transform_6, window_bounds = array<i64: 32, 1>}, {pipeline_mode = #tpu.pipeline_mode<synchronous>, transform_indices = @transform_7, window_bounds = array<i64: 128, 1>}, {transform_indices = @transform_8, window_bounds = array<i64: 1, 16, 256>}]} {
    %c0 = arith.constant 0 : index
    %c0_0 = arith.constant 0 : index
    %c0_1 = arith.constant 0 : index
    %0 = vector.load %arg1[%c0, %c0_0, %c0_1] : memref<1x8x256xbf16, #tpu.memory_space<vmem>>, vector<1x8x256xbf16>
    %1 = vector.shape_cast %0 : vector<1x8x256xbf16> to vector<8x256xbf16>
    %c0_2 = arith.constant 0 : index
    %c0_3 = arith.constant 0 : index
    %c0_4 = arith.constant 0 : index
    %2 = vector.load %arg2[%c0_2, %c0_3, %c0_4] : memref<1x8x256xbf16, #tpu.memory_space<vmem>>, vector<1x8x256xbf16>
    %3 = vector.shape_cast %2 : vector<1x8x256xbf16> to vector<8x256xbf16>
    %c0_5 = arith.constant 0 : index
    %c0_6 = arith.constant 0 : index
    %4 = vector.load %arg3[%c0_5, %c0_6] : memref<128x256xbf16, #tpu.memory_space<vmem>>, vector<128x256xbf16>
    %c0_7 = arith.constant 0 : index
    %c0_8 = arith.constant 0 : index
    %5 = vector.load %arg4[%c0_7, %c0_8] : memref<32x8xbf16, #tpu.memory_space<vmem>>, vector<32x8xbf16>
    %cst = arith.constant dense<0.000000e+00> : vector<32x256xf32>
    %6 = tpu.matmul %5, %1, %cst {dimension_numbers = #tpu.dot_dimension_numbers<[1], [0], [0], [1], [0, 0, 1, 1], [], []>} : vector<32x8xbf16>, vector<8x256xbf16>, vector<32x256xf32> -> vector<32x256xf32>
    %c0_9 = arith.constant 0 : index
    %c0_10 = arith.constant 0 : index
    %7 = vector.load %arg7[%c0_9, %c0_10] : memref<32x1xf32, #tpu.memory_space<vmem>>, vector<32x1xf32>
    %8 = vector.broadcast %7 : vector<32x1xf32> to vector<32x256xf32>
    %9 = arith.addf %6, %8 : vector<32x256xf32>
    %10 = vector.extract_strided_slice %9 {offsets = [0, 0], sizes = [16, 256], strides = [1, 1]} : vector<32x256xf32> to vector<16x256xf32>
    %11 = vector.extract_strided_slice %9 {offsets = [16, 0], sizes = [16, 256], strides = [1, 1]} : vector<32x256xf32> to vector<16x256xf32>
    %cst_11 = arith.constant dense<0.000000e+00> : vector<8x128xf32>
    %12 = tpu.matmul %3, %4, %cst_11 {dimension_numbers = #tpu.dot_dimension_numbers<[1], [1], [0], [0], [0, 0, 1, 0], [], []>} : vector<8x256xbf16>, vector<128x256xbf16>, vector<8x128xf32> -> vector<8x128xf32>
    %c0_12 = arith.constant 0 : index
    %c0_13 = arith.constant 0 : index
    %13 = vector.load %arg5[%c0_12, %c0_13] : memref<32x8xbf16, #tpu.memory_space<vmem>>, vector<32x8xbf16>
    %14 = arith.truncf %12 : vector<8x128xf32> to vector<8x128xbf16>
    %cst_14 = arith.constant dense<0.000000e+00> : vector<32x128xf32>
    %15 = tpu.matmul %13, %14, %cst_14 {dimension_numbers = #tpu.dot_dimension_numbers<[1], [0], [0], [1], [0, 0, 1, 1], [], []>} : vector<32x8xbf16>, vector<8x128xbf16>, vector<32x128xf32> -> vector<32x128xf32>
    %16 = vector.extract_strided_slice %15 {offsets = [0, 0], sizes = [16, 128], strides = [1, 1]} : vector<32x128xf32> to vector<16x128xf32>
    %17 = vector.extract_strided_slice %15 {offsets = [16, 0], sizes = [16, 128], strides = [1, 1]} : vector<32x128xf32> to vector<16x128xf32>
    %18 = arith.truncf %16 : vector<16x128xf32> to vector<16x128xbf16>
    %19 = arith.truncf %10 : vector<16x256xf32> to vector<16x256xbf16>
    %cst_15 = arith.constant dense<0.000000e+00> : vector<128x256xf32>
    %20 = tpu.matmul %18, %19, %cst_15 {dimension_numbers = #tpu.dot_dimension_numbers<[0], [0], [1], [1], [0, 1, 1, 1], [], []>} : vector<16x128xbf16>, vector<16x256xbf16>, vector<128x256xf32> -> vector<128x256xf32>
    %c0_16 = arith.constant 0 : index
    %c0_17 = arith.constant 0 : index
    %21 = vector.load %arg8[%c0_16, %c0_17] : memref<128x1xf32, #tpu.memory_space<vmem>>, vector<128x1xf32>
    %22 = vector.broadcast %21 : vector<128x1xf32> to vector<128x256xf32>
    %23 = arith.addf %20, %22 : vector<128x256xf32>
    %cst_18 = arith.constant dense<0xFF800000> : vector<256xf32>
    %24 = vector.multi_reduction <maximumf>, %23, %cst_18 [0] : vector<128x256xf32> to vector<256xf32>
    %25 = vector.shape_cast %24 : vector<256xf32> to vector<1x256xf32>
    %26 = vector.broadcast %25 : vector<1x256xf32> to vector<128x256xf32>
    %27 = arith.subf %23, %26 : vector<128x256xf32>
    %28 = math.exp %27 : vector<128x256xf32>
    %cst_19 = arith.constant dense<0.000000e+00> : vector<256xf32>
    %29 = vector.multi_reduction <add>, %28, %cst_19 [0] : vector<128x256xf32> to vector<256xf32>
    %30 = vector.shape_cast %29 : vector<256xf32> to vector<1x256xf32>
    %31 = tpu.reciprocal %30 {approx = true} : vector<1x256xf32> -> vector<1x256xf32>
    %32 = vector.broadcast %31 : vector<1x256xf32> to vector<128x256xf32>
    %33 = arith.mulf %28, %32 : vector<128x256xf32>
    %34 = arith.truncf %17 : vector<16x128xf32> to vector<16x128xbf16>
    %35 = arith.truncf %33 : vector<128x256xf32> to vector<128x256xbf16>
    %cst_20 = arith.constant dense<0.000000e+00> : vector<16x256xf32>
    %36 = tpu.matmul %34, %35, %cst_20 {dimension_numbers = #tpu.dot_dimension_numbers<[1], [0], [0], [1], [0, 0, 1, 1], [], []>} : vector<16x128xbf16>, vector<128x256xbf16>, vector<16x256xf32> -> vector<16x256xf32>
    %c0_21 = arith.constant 0 : index
    %c0_22 = arith.constant 0 : index
    %37 = vector.load %arg6[%c0_21, %c0_22] : memref<16x16xbf16, #tpu.memory_space<vmem>>, vector<16x16xbf16>
    %38 = arith.truncf %36 : vector<16x256xf32> to vector<16x256xbf16>
    %cst_23 = arith.constant dense<0.000000e+00> : vector<16x256xf32>
    %39 = tpu.matmul %37, %38, %cst_23 {dimension_numbers = #tpu.dot_dimension_numbers<[1], [0], [0], [1], [0, 0, 1, 1], [], []>} : vector<16x16xbf16>, vector<16x256xbf16>, vector<16x256xf32> -> vector<16x256xf32>
    %40 = arith.addf %39, %11 : vector<16x256xf32>
    %41 = arith.truncf %40 : vector<16x256xf32> to vector<16x256xbf16>
    %c0_24 = arith.constant 0 : index
    %c0_25 = arith.constant 0 : index
    %c0_26 = arith.constant 0 : index
    %42 = vector.load %arg9[%c0_24, %c0_25, %c0_26] : memref<1x16x256xbf16, #tpu.memory_space<vmem>>, vector<1x16x256xbf16>
    %43 = vector.shape_cast %42 : vector<1x16x256xbf16> to vector<16x256xbf16>
    %44 = vector.shape_cast %41 : vector<16x256xbf16> to vector<1x16x256xbf16>
    tpu.vector_store %arg9[%c0_24, %c0_25, %c0_26], %44 {strides = array<i32>} : memref<1x16x256xbf16, #tpu.memory_space<vmem>>, vector<1x16x256xbf16>,
    return
  }
  func.func @transform_0(%arg0: i32) -> (i32, i32, i32) {
    %c0_i32 = arith.constant 0 : i32
    %c0_i32_0 = arith.constant 0 : i32
    %c0_i32_1 = arith.constant 0 : i32
    return %arg0, %c0_i32, %c0_i32_0 : i32, i32, i32
  }
  func.func @transform_1(%arg0: i32) -> (i32, i32, i32) {
    %c0_i32 = arith.constant 0 : i32
    %c0_i32_0 = arith.constant 0 : i32
    %c0_i32_1 = arith.constant 0 : i32
    return %arg0, %c0_i32, %c0_i32_0 : i32, i32, i32
  }
  func.func @transform_2(%arg0: i32) -> (i32, i32) {
    %c0_i32 = arith.constant 0 : i32
    %c0_i32_0 = arith.constant 0 : i32
    %c0_i32_1 = arith.constant 0 : i32
    return %c0_i32, %c0_i32_0 : i32, i32
  }
  func.func @transform_3(%arg0: i32) -> (i32, i32) {
    %c0_i32 = arith.constant 0 : i32
    %c0_i32_0 = arith.constant 0 : i32
    %c0_i32_1 = arith.constant 0 : i32
    return %c0_i32, %c0_i32_0 : i32, i32
  }
  func.func @transform_4(%arg0: i32) -> (i32, i32) {
    %c0_i32 = arith.constant 0 : i32
    %c0_i32_0 = arith.constant 0 : i32
    %c0_i32_1 = arith.constant 0 : i32
    return %c0_i32, %c0_i32_0 : i32, i32
  }
  func.func @transform_5(%arg0: i32) -> (i32, i32) {
    %c0_i32 = arith.constant 0 : i32
    %c0_i32_0 = arith.constant 0 : i32
    %c0_i32_1 = arith.constant 0 : i32
    return %c0_i32, %c0_i32_0 : i32, i32
  }
  func.func @transform_6(%arg0: i32) -> (i32, i32) {
    %c0_i32 = arith.constant 0 : i32
    %c0_i32_0 = arith.constant 0 : i32
    %c0_i32_1 = arith.constant 0 : i32
    return %c0_i32, %c0_i32_0 : i32, i32
  }
  func.func @transform_7(%arg0: i32) -> (i32, i32) {
    %c0_i32 = arith.constant 0 : i32
    %c0_i32_0 = arith.constant 0 : i32
    %c0_i32_1 = arith.constant 0 : i32
    return %c0_i32, %c0_i32_0 : i32, i32
  }
  func.func @transform_8(%arg0: i32) -> (i32, i32, i32) {
    %c0_i32 = arith.constant 0 : i32
    %c0_i32_0 = arith.constant 0 : i32
    %c0_i32_1 = arith.constant 0 : i32
    return %arg0, %c0_i32, %c0_i32_0 : i32, i32, i32
  }
}

</mosaic_0001>

<llo_original>
// kernel: tpu_custom_call.1
$region0: #{tpu_custom_call.1}
  #allocation0 [shape = 'u32[]', space=smem, size = 0x4, offset = 0x4, fixed_abs, tag = 'smem constant byte address 0x4 - core index']
  #allocation1 [shape = 'u32[144,128]{1,0:T(1,128)}', space=vmem, size = 0x12000, scoped, tag = 'internal scratch']
  %s0 = inlined_call_operand.vmem [shape: bf16[2,8,256], index: 0, kind: input, shape index: {}]
  %s1 = inlined_call_operand.vmem [shape: bf16[2,8,256], index: 1, kind: input, shape index: {}]
  %s2 = inlined_call_operand.vmem [shape: bf16[128,256], index: 2, kind: input, shape index: {}]
  %s3 = inlined_call_operand.vmem [shape: bf16[32,8], index: 3, kind: input, shape index: {}]
  %s4 = inlined_call_operand.vmem [shape: bf16[32,8], index: 4, kind: input, shape index: {}]
  %s5 = inlined_call_operand.vmem [shape: bf16[16,16], index: 5, kind: input, shape index: {}]
  %s6 = inlined_call_operand.vmem [shape: f32[32,1], index: 6, kind: input, shape index: {}]
  %s7 = inlined_call_operand.vmem [shape: f32[128,1], index: 7, kind: input, shape index: {}]
  %s8 = inlined_call_operand.hbm [shape: bf16[2,16,256], index: 8, kind: output, shape index: {}]
  %s9 = sld [smem:[#allocation0]]
  $region65: #{tpu_custom_call.1} parent=0
    _
  %s11 = ssub.s32 1, %s9
  %s12 = scalar_select 0, %s11, %s9
  $region1: #{tpu_custom_call.1} parent=0
    #allocation2 [shape = 'u8[16384]{0}', space=vmem, size = 0x4000, scoped, tag = 'output window, operand 0']
    #allocation3 [shape = 's32[2]{0}', space=sflag, size = 0x8, scoped, tag = 'scoped memory for tpu_custom_call.1']
    %13 = vsyncpa [#allocation3], 0
    %s14 = scalar_lea.sflag [#allocation3], 1
    %15 = vsyncpa %s14, 0
    loop: start=0, step=1, limit=4
    $region2: #{tpu_custom_call.1} parent=1 // loop_pre_header
      _
    $region3: #{tpu_custom_call.1} parent=1 // loop_header
      %s17 = sphi 0, %s21
      %p18 = scmp.ge.s32.totalorder %s17, 4
      %s27 = sphi 0, %s29
      %s30 = sphi 0, %s27
      %s31 = sphi 0, %s30
      %s47 = sphi 0, %s31
      %s53 = sphi 0, %s55
      %s56 = sphi 0, %s53
      %s57 = sphi 0, %s56
      %s73 = sphi 0, %s57
      %s77 = sphi 0, %s77
      %s79 = sphi 0, %s77
      %s80 = sphi 0, %s79
      %s94 = sphi 0, %s80
      %s98 = sphi 0, %s98
      %s100 = sphi 0, %s98
      %s101 = sphi 0, %s100
      %s115 = sphi 0, %s101
      %s119 = sphi 0, %s119
      %s121 = sphi 0, %s119
      %s122 = sphi 0, %s121
      %s136 = sphi 0, %s122
      %s140 = sphi 0, %s140
      %s142 = sphi 0, %s140
      %s143 = sphi 0, %s142
      %s157 = sphi 0, %s143
      %s161 = sphi 0, %s161
      %s163 = sphi 0, %s161
      %s164 = sphi 0, %s163
      %s178 = sphi 0, %s164
      %s182 = sphi 0, %s182
      %s184 = sphi 0, %s182
      %s185 = sphi 0, %s184
      %s199 = sphi 0, %s185
      %s205 = sphi 0, %s207
      %s208 = sphi 0, %s205
      %s209 = sphi 0, %s208
      %s225 = sphi 0, %s209
    $region4: #{tpu_custom_call.1} parent=1 // loop_header_branch
      %20 = sbr.rel (%p18) target = $region8
    $region5: #{tpu_custom_call.1} parent=1 // loop_body
      %s22 = ssub.s32 %s17, 1
      %s23 = ssub.s32 %s17, 2
      %s24 = sadd.s32 %s17, 1
      %s25 = ssub.s32 %s17, %s24
      %p26 = scmp.eq.s32.totalorder %s25, 0
      %s28 = sadd.s32 %s27, 1
      %s29 = scalar_select %p26, %s27, %s28
      %p32 = pneg %p26
      %p33 = scmp.eq.s32.totalorder %s17, 1
      %p34 = por %p32, %p33
      %p35 = scmp.ne.s32.totalorder %s27, %s30
      %p36 = scmp.eq.s32.totalorder %s17, 0
      %p37 = por %p35, %p36
      %p38 = scmp.ne.s32.totalorder %s27, %s30
      %p39 = scmp.eq.s32.totalorder %s22, 1
      %p40 = por %p38, %p39
      %p41 = scmp.ne.s32.totalorder %s30, %s31
      %p42 = scmp.eq.s32.totalorder %s22, 0
      %p43 = por %p41, %p42
      %p44 = scmp.ne.s32.totalorder %s30, %s31
      %p45 = scmp.eq.s32.totalorder %s23, 1
      %p46 = por %p44, %p45
      %p48 = scmp.ne.s32.totalorder %s31, %s47
      %p49 = scmp.eq.s32.totalorder %s23, 0
      %p50 = por %p48, %p49
      %s51 = ssub.s32 %s17, %s24
      %p52 = scmp.eq.s32.totalorder %s51, 0
      %s54 = sadd.s32 %s53, 1
      %s55 = scalar_select %p52, %s53, %s54
      %p58 = pneg %p52
      %p59 = scmp.eq.s32.totalorder %s17, 1
      %p60 = por %p58, %p59
      %p61 = scmp.ne.s32.totalorder %s53, %s56
      %p62 = scmp.eq.s32.totalorder %s17, 0
      %p63 = por %p61, %p62
      %p64 = scmp.ne.s32.totalorder %s53, %s56
      %p65 = scmp.eq.s32.totalorder %s22, 1
      %p66 = por %p64, %p65
      %p67 = scmp.ne.s32.totalorder %s56, %s57
      %p68 = scmp.eq.s32.totalorder %s22, 0
      %p69 = por %p67, %p68
      %p70 = scmp.ne.s32.totalorder %s56, %s57
      %p71 = scmp.eq.s32.totalorder %s23, 1
      %p72 = por %p70, %p71
      %p74 = scmp.ne.s32.totalorder %s57, %s73
      %p75 = scmp.eq.s32.totalorder %s23, 0
      %p76 = por %p74, %p75
      %s78 = sadd.s32 %s77, 1
      %p81 = scmp.eq.s32.totalorder %s17, 1
      %p82 = scmp.ne.s32.totalorder %s77, %s79
      %p83 = scmp.eq.s32.totalorder %s17, 0
      %p84 = por %p82, %p83
      %p85 = scmp.ne.s32.totalorder %s77, %s79
      %p86 = scmp.eq.s32.totalorder %s22, 1
      %p87 = por %p85, %p86
      %p88 = scmp.ne.s32.totalorder %s79, %s80
      %p89 = scmp.eq.s32.totalorder %s22, 0
      %p90 = por %p88, %p89
      %p91 = scmp.ne.s32.totalorder %s79, %s80
      %p92 = scmp.eq.s32.totalorder %s23, 1
      %p93 = por %p91, %p92
      %p95 = scmp.ne.s32.totalorder %s80, %s94
      %p96 = scmp.eq.s32.totalorder %s23, 0
      %p97 = por %p95, %p96
      %s99 = sadd.s32 %s98, 1
      %p102 = scmp.eq.s32.totalorder %s17, 1
      %p103 = scmp.ne.s32.totalorder %s98, %s100
      %p104 = scmp.eq.s32.totalorder %s17, 0
      %p105 = por %p103, %p104
      %p106 = scmp.ne.s32.totalorder %s98, %s100
      %p107 = scmp.eq.s32.totalorder %s22, 1
      %p108 = por %p106, %p107
      %p109 = scmp.ne.s32.totalorder %s100, %s101
      %p110 = scmp.eq.s32.totalorder %s22, 0
      %p111 = por %p109, %p110
      %p112 = scmp.ne.s32.totalorder %s100, %s101
      %p113 = scmp.eq.s32.totalorder %s23, 1
      %p114 = por %p112, %p113
      %p116 = scmp.ne.s32.totalorder %s101, %s115
      %p117 = scmp.eq.s32.totalorder %s23, 0
      %p118 = por %p116, %p117
      %s120 = sadd.s32 %s119, 1
      %p123 = scmp.eq.s32.totalorder %s17, 1
      %p124 = scmp.ne.s32.totalorder %s119, %s121
      %p125 = scmp.eq.s32.totalorder %s17, 0
      %p126 = por %p124, %p125
      %p127 = scmp.ne.s32.totalorder %s119, %s121
      %p128 = scmp.eq.s32.totalorder %s22, 1
      %p129 = por %p127, %p128
      %p130 = scmp.ne.s32.totalorder %s121, %s122
      %p131 = scmp.eq.s32.totalorder %s22, 0
      %p132 = por %p130, %p131
      %p133 = scmp.ne.s32.totalorder %s121, %s122
      %p134 = scmp.eq.s32.totalorder %s23, 1
      %p135 = por %p133, %p134
      %p137 = scmp.ne.s32.totalorder %s122, %s136
      %p138 = scmp.eq.s32.totalorder %s23, 0
      %p139 = por %p137, %p138
      %s141 = sadd.s32 %s140, 1
      %p144 = scmp.eq.s32.totalorder %s17, 1
      %p145 = scmp.ne.s32.totalorder %s140, %s142
      %p146 = scmp.eq.s32.totalorder %s17, 0
      %p147 = por %p145, %p146
      %p148 = scmp.ne.s32.totalorder %s140, %s142
      %p149 = scmp.eq.s32.totalorder %s22, 1
      %p150 = por %p148, %p149
      %p151 = scmp.ne.s32.totalorder %s142, %s143
      %p152 = scmp.eq.s32.totalorder %s22, 0
      %p153 = por %p151, %p152
      %p154 = scmp.ne.s32.totalorder %s142, %s143
      %p155 = scmp.eq.s32.totalorder %s23, 1
      %p156 = por %p154, %p155
      %p158 = scmp.ne.s32.totalorder %s143, %s157
      %p159 = scmp.eq.s32.totalorder %s23, 0
      %p160 = por %p158, %p159
      %s162 = sadd.s32 %s161, 1
      %p165 = scmp.eq.s32.totalorder %s17, 1
      %p166 = scmp.ne.s32.totalorder %s161, %s163
      %p167 = scmp.eq.s32.totalorder %s17, 0
      %p168 = por %p166, %p167
      %p169 = scmp.ne.s32.totalorder %s161, %s163
      %p170 = scmp.eq.s32.totalorder %s22, 1
      %p171 = por %p169, %p170
      %p172 = scmp.ne.s32.totalorder %s163, %s164
      %p173 = scmp.eq.s32.totalorder %s22, 0
      %p174 = por %p172, %p173
      %p175 = scmp.ne.s32.totalorder %s163, %s164
      %p176 = scmp.eq.s32.totalorder %s23, 1
      %p177 = por %p175, %p176
      %p179 = scmp.ne.s32.totalorder %s164, %s178
      %p180 = scmp.eq.s32.totalorder %s23, 0
      %p181 = por %p179, %p180
      %s183 = sadd.s32 %s182, 1
      %p186 = scmp.eq.s32.totalorder %s17, 1
      %p187 = scmp.ne.s32.totalorder %s182, %s184
      %p188 = scmp.eq.s32.totalorder %s17, 0
      %p189 = por %p187, %p188
      %p190 = scmp.ne.s32.totalorder %s182, %s184
      %p191 = scmp.eq.s32.totalorder %s22, 1
      %p192 = por %p190, %p191
      %p193 = scmp.ne.s32.totalorder %s184, %s185
      %p194 = scmp.eq.s32.totalorder %s22, 0
      %p195 = por %p193, %p194
      %p196 = scmp.ne.s32.totalorder %s184, %s185
      %p197 = scmp.eq.s32.totalorder %s23, 1
      %p198 = por %p196, %p197
      %p200 = scmp.ne.s32.totalorder %s185, %s199
      %p201 = scmp.eq.s32.totalorder %s23, 0
      %p202 = por %p200, %p201
      %s203 = ssub.s32 %s17, %s24
      %p204 = scmp.eq.s32.totalorder %s203, 0
      %s206 = sadd.s32 %s205, 1
      %s207 = scalar_select %p204, %s205, %s206
      %p210 = pneg %p204
      %p211 = scmp.eq.s32.totalorder %s17, 1
      %p212 = por %p210, %p211
      %p213 = scmp.ne.s32.totalorder %s205, %s208
      %p214 = scmp.eq.s32.totalorder %s17, 0
      %p215 = por %p213, %p214
      %p216 = scmp.ne.s32.totalorder %s205, %s208
      %p217 = scmp.eq.s32.totalorder %s22, 1
      %p218 = por %p216, %p217
      %p219 = scmp.ne.s32.totalorder %s208, %s209
      %p220 = scmp.eq.s32.totalorder %s22, 0
      %p221 = por %p219, %p220
      %p222 = scmp.ne.s32.totalorder %s208, %s209
      %p223 = scmp.eq.s32.totalorder %s23, 1
      %p224 = por %p222, %p223
      %p226 = scmp.ne.s32.totalorder %s209, %s225
      %p227 = scmp.eq.s32.totalorder %s23, 0
      %p228 = por %p226, %p227
      %p229 = scmp.le.s32.totalorder 1, %s17
      %p230 = scmp.lt.s32.totalorder %s17, 3
      %p231 = pnand %p229, %p230
      %p232 = pneg %p231
      // Predicated region
      $region9: #{tpu_custom_call.1} parent=5 // pred_check
        _
      $region10: #{tpu_custom_call.1} parent=5 // pred_check_branch
        %234 = sbr.rel (%p231) target = $region12
      $region11: #{tpu_custom_call.1} parent=5 // pred_region
        %s235 = ssub.s32 %s17, 1
        // Predicated region
        $region13: #{tpu_custom_call.1} parent=11 // pred_check
          %p236 = pneg %p90
        $region14: #{tpu_custom_call.1} parent=11 // pred_check_branch
          %238 = sbr.rel (%p236) target = $region16
        $region15: #{tpu_custom_call.1} parent=11 // pred_region
          _
        $region16: #{tpu_custom_call.1} parent=11 // pred_fallthru
          _
        // Predicated region
        $region17: #{tpu_custom_call.1} parent=11 // pred_check
          %p239 = pneg %p111
        $region18: #{tpu_custom_call.1} parent=11 // pred_check_branch
          %241 = sbr.rel (%p239) target = $region20
        $region19: #{tpu_custom_call.1} parent=11 // pred_region
          _
        $region20: #{tpu_custom_call.1} parent=11 // pred_fallthru
          _
        // Predicated region
        $region21: #{tpu_custom_call.1} parent=11 // pred_check
          %p242 = pneg %p132
        $region22: #{tpu_custom_call.1} parent=11 // pred_check_branch
          %244 = sbr.rel (%p242) target = $region24
        $region23: #{tpu_custom_call.1} parent=11 // pred_region
          _
        $region24: #{tpu_custom_call.1} parent=11 // pred_fallthru
          _
        // Predicated region
        $region25: #{tpu_custom_call.1} parent=11 // pred_check
          %p245 = pneg %p153
        $region26: #{tpu_custom_call.1} parent=11 // pred_check_branch
          %247 = sbr.rel (%p245) target = $region28
        $region27: #{tpu_custom_call.1} parent=11 // pred_region
          _
        $region28: #{tpu_custom_call.1} parent=11 // pred_fallthru
          _
        // Predicated region
        $region29: #{tpu_custom_call.1} parent=11 // pred_check
          %p248 = pneg %p174
        $region30: #{tpu_custom_call.1} parent=11 // pred_check_branch
          %250 = sbr.rel (%p248) target = $region32
        $region31: #{tpu_custom_call.1} parent=11 // pred_region
          _
        $region32: #{tpu_custom_call.1} parent=11 // pred_fallthru
          _
        // Predicated region
        $region33: #{tpu_custom_call.1} parent=11 // pred_check
          %p251 = pneg %p195
        $region34: #{tpu_custom_call.1} parent=11 // pred_check_branch
          %253 = sbr.rel (%p251) target = $region36
        $region35: #{tpu_custom_call.1} parent=11 // pred_region
          _
        $region36: #{tpu_custom_call.1} parent=11 // pred_fallthru
          _
      $region12: #{tpu_custom_call.1} parent=5 // pred_fallthru
        _
      %p254 = scmp.lt.s32.totalorder %s17, 2
      // Predicated region
      $region37: #{tpu_custom_call.1} parent=5 // pred_check
        %p255 = pneg %p254
      $region38: #{tpu_custom_call.1} parent=5 // pred_check_branch
        %257 = sbr.rel (%p255) target = $region40
      $region39: #{tpu_custom_call.1} parent=5 // pred_region
        // Predicated region
        $region41: #{tpu_custom_call.1} parent=39 // pred_check
          %p258 = pneg %p37
        $region42: #{tpu_custom_call.1} parent=39 // pred_check_branch
          %260 = sbr.rel (%p258) target = $region44
        $region43: #{tpu_custom_call.1} parent=39 // pred_region
          %p261 = scmp.lt.s32.totalorder %s17, 1
          %s262 = scalar_select %p261, %s17, 1
          %s263 = smul.addr %s262, 2
          %s264 = smul.addr %s263, 4
          %s265 = scalar_lea.vmem %s0, %s264
        $region44: #{tpu_custom_call.1} parent=39 // pred_fallthru
          _
        // Predicated region
        $region45: #{tpu_custom_call.1} parent=39 // pred_check
          %p266 = pneg %p63
        $region46: #{tpu_custom_call.1} parent=39 // pred_check_branch
          %268 = sbr.rel (%p266) target = $region48
        $region47: #{tpu_custom_call.1} parent=39 // pred_region
          %p269 = scmp.lt.s32.totalorder %s17, 1
          %s270 = scalar_select %p269, %s17, 1
          %s271 = smul.addr %s270, 2
          %s272 = smul.addr %s271, 4
          %s273 = scalar_lea.vmem %s1, %s272
        $region48: #{tpu_custom_call.1} parent=39 // pred_fallthru
          _
      $region40: #{tpu_custom_call.1} parent=5 // pred_fallthru
        _
      %p274 = scmp.le.s32.totalorder 1, %s17
      %p275 = scmp.lt.s32.totalorder %s17, 3
      %p276 = pnand %p274, %p275
      %p277 = pneg %p276
      // Predicated region
      $region49: #{tpu_custom_call.1} parent=5 // pred_check
        _
      $region50: #{tpu_custom_call.1} parent=5 // pred_check_branch
        %279 = sbr.rel (%p276) target = $region52
      $region51: #{tpu_custom_call.1} parent=5 // pred_region
        %s280 = ssub.s32 %s17, 1
        %p281 = scmp.lt.s32.totalorder %s22, 1
        %s282 = scalar_select %p281, %s22, 1
        %s283 = smul.addr %s282, 2
        %s284 = smul.addr %s283, 4
        %s285 = scalar_lea.vmem %s0, %s284
        %p286 = pneg %p43
        %p287 = pneg %p40
        %p288 = scmp.lt.s32.totalorder %s22, 1
        %s289 = scalar_select %p288, %s22, 1
        %s290 = smul.addr %s289, 2
        %s291 = smul.addr %s290, 4
        %s292 = scalar_lea.vmem %s1, %s291
        %p293 = pneg %p69
        %p294 = pneg %p66
        %p295 = pneg %p90
        %p296 = pneg %p87
        %p297 = pneg %p111
        %p298 = pneg %p108
        %p299 = pneg %p132
        %p300 = pneg %p129
        %p301 = pneg %p153
        %p302 = pneg %p150
        %p303 = pneg %p174
        %p304 = pneg %p171
        %p305 = pneg %p195
        %p306 = pneg %p192
        %p307 = pneg %p221
        %p308 = pneg %p218
        %s309 = sand.u32 %s208, 1
        %s310 = scalar_lea.sflag [#allocation3], %s309
        %s311 = sand.u32 %s208, 1
        %s312 = smul.addr %s311, 16
        %s313 = scalar_lea.vmem [#allocation2], %s312
        %p314 = scmp.lt.s32.totalorder %s22, 1
        %s315 = scalar_select %p314, %s22, 1
        %s316 = smul.addr %s315, 2
        %s317 = smul.addr %s316, 4
        %s318 = scalar_lea.vmem %s0, %s317
        %p319 = scmp.lt.s32.totalorder %s22, 1
        %s320 = scalar_select %p319, %s22, 1
        %s321 = smul.addr %s320, 2
        %s322 = smul.addr %s321, 4
        %s323 = scalar_lea.vmem %s1, %s322
        %v325 = vld [vmem:[%s318] sm:$0xff]
        %v326 = vld [vmem:[%s323] sm:$0xff]
        %v327 = vld [vmem:[%s2] sm:$0xff]
        %v328 = vld [vmem:[%s2 + $0x8] sm:$0xff]
        %v329 = vld [vmem:[%s2 + $0x10] sm:$0xff]
        %v330 = vld [vmem:[%s2 + $0x18] sm:$0xff]
        %v331 = vld [vmem:[%s2 + $0x20] sm:$0xff]
        %v332 = vld [vmem:[%s2 + $0x28] sm:$0xff]
        %v333 = vld [vmem:[%s2 + $0x30] sm:$0xff]
        %v334 = vld [vmem:[%s2 + $0x38] sm:$0xff]
        %v335 = vld [vmem:[%s2 + $0x40] sm:$0xff]
        %v336 = vld [vmem:[%s2 + $0x48] sm:$0xff]
        %v337 = vld [vmem:[%s2 + $0x50] sm:$0xff]
        %v338 = vld [vmem:[%s2 + $0x58] sm:$0xff]
        %v339 = vld [vmem:[%s2 + $0x60] sm:$0xff]
        %v340 = vld [vmem:[%s2 + $0x68] sm:$0xff]
        %v341 = vld [vmem:[%s2 + $0x70] sm:$0xff]
        %v342 = vld [vmem:[%s2 + $0x78] sm:$0xff]
        %v343 = vld [vmem:[%s3] sm:$0xf]
        %v344 = vld [vmem:[%s3 + $0x4] sm:$0xf]
        %v345 = vld [vmem:[%s3 + $0x8] sm:$0xf]
        %v346 = vld [vmem:[%s3 + $0xc] sm:$0xf]
        %v347 = vld [vmem:[%s6] sm:$0xff]
        %v348 = vld [vmem:[%s6 + $0x8] sm:$0xff]
        %v349 = vld [vmem:[%s6 + $0x10] sm:$0xff]
        %v350 = vld [vmem:[%s6 + $0x18] sm:$0xff]
        %352 = vset.pattern.permute.xlu0 0
        %353 = vperm.xlu0 %352, %v347
        %v354 = vpop.permute.xlu0 %353
        %357 = vset.pattern.permute.xlu0 0
        %358 = vperm.xlu0 %357, %v348
        %v359 = vpop.permute.xlu0 %358
        %362 = vset.pattern.permute.xlu0 0
        %363 = vperm.xlu0 %362, %v349
        %v364 = vpop.permute.xlu0 %363
        %367 = vset.pattern.permute.xlu0 0
        %368 = vperm.xlu0 %367, %v350
        %v369 = vpop.permute.xlu0 %368
        %v375 = vunpack.c.l.b16 %v343
        %v376 = vunpack.c.l.b16 %v344
        %v377 = vunpack.c.l.b16 %v345
        %v378 = vunpack.c.l.b16 %v346
        %v379 = vpack.c.b16 %v376, %v375
        %v380 = vpack.c.b16 %v378, %v377
        %v382 = vunpack.c.l.b16 %v325
        %v383 = vunpack.c.h.b16 %v325
        %v384 = vpack.c.b16 %v382, %v382
        %v385 = vpack.c.b16 %v383, %v383
        %vm386 = vcmask 64512
        %v388 = vsel %vm386, %v379, 0
        %v391 = vsel %vm386, %v380, 0
        %vm393 = vcmask 1043456
        %v395 = vsel %vm393, %v384, 0
        %v398 = vsel %vm393, %v385, 0
        %400 = vmatprep.subr.bf16.mxu0 0
        %401 = vmatpush1.bf16.msra.mxu0 0
        %402 = vmatprep.subr.bf16.mxu0 0
        %403 = vmatpush1.bf16.msra.mxu0 0
        %404 = vmatprep.subr.bf16.mxu0 0
        %405 = vmatpush1.bf16.msra.mxu0 0
        %406 = vmatprep.subr.bf16.mxu0 0
        %407 = vmatpush1.bf16.msra.mxu0 0
        %408 = vmatprep.subr.bf16.mxu0 0
        %409 = vmatpush1.bf16.msra.mxu0 0
        %410 = vmatprep.subr.bf16.mxu0 0
        %411 = vmatpush1.bf16.msra.mxu0 0
        %412 = vmatprep.subr.bf16.mxu0 0
        %413 = vmatpush1.bf16.msra.mxu0 0
        %414 = vmatprep.subr.bf16.mxu0 %v398
        %415 = vmatpush1.bf16.msra.mxu0 %v395
        %416 = vmatprep.subr.bf16.mxu0 0
        %417 = vmatpush2.bf16.msra.mxu0 0
        %418 = vmatprep.subr.bf16.mxu0 0
        %419 = vmatpush2.bf16.msra.mxu0 0
        %420 = vmatprep.subr.bf16.mxu0 0
        %421 = vmatpush2.bf16.msra.mxu0 0
        %422 = vmatprep.subr.bf16.mxu0 0
        %423 = vmatpush2.bf16.msra.mxu0 0
        %424 = vmatprep.subr.bf16.mxu0 0
        %425 = vmatpush2.bf16.msra.mxu0 0
        %426 = vmatprep.subr.bf16.mxu0 0
        %427 = vmatpush2.bf16.msra.mxu0 0
        %428 = vmatprep.subr.bf16.mxu0 0
        %429 = vmatpush2.bf16.msra.mxu0 0
        %430 = vmatprep.subr.bf16.mxu0 0
        %431 = vmatpush2.bf16.msra.mxu0 0
        %432 = vmatprep.mubr.bf16.mxu0 0
        %433 = vmatmul.mubr.bf16.gmra.mxu0 %v388
        %v434 = vpop.f32.mrf.mxu0
        %v435 = vadd.f32 %v354, %v434
        %v436 = vpop.f32.mrf.mxu0
        %v437 = vadd.f32 %v354, %v436
        %v438 = vpop.f32.mrf.mxu0
        %v439 = vadd.f32 %v359, %v438
        %v440 = vpop.f32.mrf.mxu0
        %v441 = vadd.f32 %v359, %v440
        %442 = vmatprep.mubr.bf16.mxu0 0
        %443 = vmatmul.mubr.bf16.gmra.mxu0 %v391
        %v444 = vpop.f32.mrf.mxu0
        %v445 = vadd.f32 %v364, %v444
        %v446 = vpop.f32.mrf.mxu0
        %v447 = vadd.f32 %v364, %v446
        %v448 = vpop.f32.mrf.mxu0
        %v449 = vadd.f32 %v369, %v448
        %v450 = vpop.f32.mrf.mxu0
        %v451 = vadd.f32 %v369, %v450
        %452 = vdwg.mxu0
        %v454 = vunpack.c.l.b16 %v326
        %v455 = vunpack.c.h.b16 %v326
        %v456 = vpack.c.b16 %v454, %v454
        %v457 = vpack.c.b16 %v455, %v455
        %v476 = vunpack.c.l.b16 %v327
        %v477 = vunpack.c.h.b16 %v327
        %v478 = vunpack.c.l.b16 %v328
        %v479 = vunpack.c.h.b16 %v328
        %v480 = vunpack.c.l.b16 %v329
        %v481 = vunpack.c.h.b16 %v329
        %v482 = vunpack.c.l.b16 %v330
        %v483 = vunpack.c.h.b16 %v330
        %v484 = vunpack.c.l.b16 %v331
        %v485 = vunpack.c.h.b16 %v331
        %v486 = vunpack.c.l.b16 %v332
        %v487 = vunpack.c.h.b16 %v332
        %v488 = vunpack.c.l.b16 %v333
        %v489 = vunpack.c.h.b16 %v333
        %v490 = vunpack.c.l.b16 %v334
        %v491 = vunpack.c.h.b16 %v334
        %v492 = vunpack.c.l.b16 %v335
        %v493 = vunpack.c.h.b16 %v335
        %v494 = vunpack.c.l.b16 %v336
        %v495 = vunpack.c.h.b16 %v336
        %v496 = vunpack.c.l.b16 %v337
        %v497 = vunpack.c.h.b16 %v337
        %v498 = vunpack.c.l.b16 %v338
        %v499 = vunpack.c.h.b16 %v338
        %v500 = vunpack.c.l.b16 %v339
        %v501 = vunpack.c.h.b16 %v339
        %v502 = vunpack.c.l.b16 %v340
        %v503 = vunpack.c.h.b16 %v340
        %v504 = vunpack.c.l.b16 %v341
        %v505 = vunpack.c.h.b16 %v341
        %v506 = vunpack.c.l.b16 %v342
        %v507 = vunpack.c.h.b16 %v342
        %v508 = vpack.c.b16 %v478, %v476
        %v509 = vpack.c.b16 %v479, %v477
        %v510 = vpack.c.b16 %v482, %v480
        %v511 = vpack.c.b16 %v483, %v481
        %v512 = vpack.c.b16 %v486, %v484
        %v513 = vpack.c.b16 %v487, %v485
        %v514 = vpack.c.b16 %v490, %v488
        %v515 = vpack.c.b16 %v491, %v489
        %v516 = vpack.c.b16 %v494, %v492
        %v517 = vpack.c.b16 %v495, %v493
        %v518 = vpack.c.b16 %v498, %v496
        %v519 = vpack.c.b16 %v499, %v497
        %v520 = vpack.c.b16 %v502, %v500
        %v521 = vpack.c.b16 %v503, %v501
        %v522 = vpack.c.b16 %v506, %v504
        %v523 = vpack.c.b16 %v507, %v505
        %540 = vmatprep.subr.bf16.mxu0 %v523
        %541 = vmatpush1.bf16.xpose.msra.mxu0 %v522
        %542 = vmatprep.subr.bf16.mxu0 %v521
        %543 = vmatpush1.bf16.xpose.msra.mxu0 %v520
        %544 = vmatprep.subr.bf16.mxu0 %v519
        %545 = vmatpush1.bf16.xpose.msra.mxu0 %v518
        %546 = vmatprep.subr.bf16.mxu0 %v517
        %547 = vmatpush1.bf16.xpose.msra.mxu0 %v516
        %548 = vmatprep.subr.bf16.mxu0 %v515
        %549 = vmatpush1.bf16.xpose.msra.mxu0 %v514
        %550 = vmatprep.subr.bf16.mxu0 %v513
        %551 = vmatpush1.bf16.xpose.msra.mxu0 %v512
        %552 = vmatprep.subr.bf16.mxu0 %v511
        %553 = vmatpush1.bf16.xpose.msra.mxu0 %v510
        %554 = vmatprep.subr.bf16.mxu0 %v509
        %555 = vmatpush1.bf16.xpose.msra.mxu0 %v508
        %556 = vmatprep.subr.bf16.mxu0 0
        %557 = vmatpush2.bf16.xpose.msra.mxu0 0
        %558 = vmatprep.subr.bf16.mxu0 0
        %559 = vmatpush2.bf16.xpose.msra.mxu0 0
        %560 = vmatprep.subr.bf16.mxu0 0
        %561 = vmatpush2.bf16.xpose.msra.mxu0 0
        %562 = vmatprep.subr.bf16.mxu0 0
        %563 = vmatpush2.bf16.xpose.msra.mxu0 0
        %564 = vmatprep.subr.bf16.mxu0 0
        %565 = vmatpush2.bf16.xpose.msra.mxu0 0
        %566 = vmatprep.subr.bf16.mxu0 0
        %567 = vmatpush2.bf16.xpose.msra.mxu0 0
        %568 = vmatprep.subr.bf16.mxu0 0
        %569 = vmatpush2.bf16.xpose.msra.mxu0 0
        %570 = vmatprep.subr.bf16.mxu0 0
        %571 = vmatpush2.bf16.xpose.msra.mxu0 0
        %572 = vmatprep.mubr.bf16.mxu0 %v457
        %573 = vmatmul.mubr.bf16.gmra.mxu0 %v456
        %v574 = vpop.f32.mrf.mxu0
        %v575 = vadd.f32 0.0, %v574
        %v576 = vpop.f32.mrf.mxu0
        %v577 = vpop.f32.mrf.mxu0
        %v578 = vpop.f32.mrf.mxu0
        %579 = vdwg.mxu0
        %v580 = vld [vmem:[%s4] sm:$0xf]
        %v581 = vld [vmem:[%s4 + $0x4] sm:$0xf]
        %v582 = vld [vmem:[%s4 + $0x8] sm:$0xf]
        %v583 = vld [vmem:[%s4 + $0xc] sm:$0xf]
        %v584 = vpack.c.bf16 %v575, %v575
        %v589 = vunpack.c.l.b16 %v580
        %v590 = vunpack.c.l.b16 %v581
        %v591 = vunpack.c.l.b16 %v582
        %v592 = vunpack.c.l.b16 %v583
        %v593 = vpack.c.b16 %v590, %v589
        %v594 = vpack.c.b16 %v592, %v591
        %v596 = vsel %vm386, %v593, 0
        %v599 = vsel %vm386, %v594, 0
        %v602 = vsel %vm393, %v584, 0
        %604 = vmatprep.subr.bf16.mxu0 0
        %605 = vmatpush1.bf16.msra.mxu0 0
        %606 = vmatprep.subr.bf16.mxu0 0
        %607 = vmatpush1.bf16.msra.mxu0 0
        %608 = vmatprep.subr.bf16.mxu0 0
        %609 = vmatpush1.bf16.msra.mxu0 0
        %610 = vmatprep.subr.bf16.mxu0 0
        %611 = vmatpush1.bf16.msra.mxu0 0
        %612 = vmatprep.subr.bf16.mxu0 0
        %613 = vmatpush1.bf16.msra.mxu0 0
        %614 = vmatprep.subr.bf16.mxu0 0
        %615 = vmatpush1.bf16.msra.mxu0 0
        %616 = vmatprep.subr.bf16.mxu0 0
        %617 = vmatpush1.bf16.msra.mxu0 0
        %618 = vmatprep.subr.bf16.mxu0 0
        %619 = vmatpush1.bf16.msra.mxu0 %v602
        %620 = vmatprep.subr.bf16.mxu0 0
        %621 = vmatpush2.bf16.msra.mxu0 0
        %622 = vmatprep.subr.bf16.mxu0 0
        %623 = vmatpush2.bf16.msra.mxu0 0
        %624 = vmatprep.subr.bf16.mxu0 0
        %625 = vmatpush2.bf16.msra.mxu0 0
        %626 = vmatprep.subr.bf16.mxu0 0
        %627 = vmatpush2.bf16.msra.mxu0 0
        %628 = vmatprep.subr.bf16.mxu0 0
        %629 = vmatpush2.bf16.msra.mxu0 0
        %630 = vmatprep.subr.bf16.mxu0 0
        %631 = vmatpush2.bf16.msra.mxu0 0
        %632 = vmatprep.subr.bf16.mxu0 0
        %633 = vmatpush2.bf16.msra.mxu0 0
        %634 = vmatprep.subr.bf16.mxu0 0
        %635 = vmatpush2.bf16.msra.mxu0 0
        %636 = vmatprep.mubr.bf16.mxu0 0
        %637 = vmatmul.mubr.bf16.gmra.mxu0 %v596
        %v638 = vpop.f32.mrf.mxu0
        %v639 = vadd.f32 0.0, %v638
        %v640 = vpop.f32.mrf.mxu0
        %v641 = vpop.f32.mrf.mxu0
        %v642 = vadd.f32 0.0, %v641
        %v643 = vpop.f32.mrf.mxu0
        %644 = vmatprep.mubr.bf16.mxu0 0
        %645 = vmatmul.mubr.bf16.gmra.mxu0 %v599
        %v646 = vpop.f32.mrf.mxu0
        %v647 = vadd.f32 0.0, %v646
        %v648 = vpop.f32.mrf.mxu0
        %v649 = vpop.f32.mrf.mxu0
        %v650 = vadd.f32 0.0, %v649
        %v651 = vpop.f32.mrf.mxu0
        %652 = vdwg.mxu0
        %v653 = vpack.c.bf16 %v642, %v639
        %v654 = vpack.c.bf16 %v439, %v435
        %v655 = vpack.c.bf16 %v441, %v437
        %v656 = vld [vmem:[%s7] sm:$0xff]
        %v657 = vld [vmem:[%s7 + $0x8] sm:$0xff]
        %v658 = vld [vmem:[%s7 + $0x10] sm:$0xff]
        %v659 = vld [vmem:[%s7 + $0x18] sm:$0xff]
        %v660 = vld [vmem:[%s7 + $0x20] sm:$0xff]
        %v661 = vld [vmem:[%s7 + $0x28] sm:$0xff]
        %v662 = vld [vmem:[%s7 + $0x30] sm:$0xff]
        %v663 = vld [vmem:[%s7 + $0x38] sm:$0xff]
        %v664 = vld [vmem:[%s7 + $0x40] sm:$0xff]
        %v665 = vld [vmem:[%s7 + $0x48] sm:$0xff]
        %v666 = vld [vmem:[%s7 + $0x50] sm:$0xff]
        %v667 = vld [vmem:[%s7 + $0x58] sm:$0xff]
        %v668 = vld [vmem:[%s7 + $0x60] sm:$0xff]
        %v669 = vld [vmem:[%s7 + $0x68] sm:$0xff]
        %v670 = vld [vmem:[%s7 + $0x70] sm:$0xff]
        %v671 = vld [vmem:[%s7 + $0x78] sm:$0xff]
        %673 = vset.pattern.permute.xlu0 0
        %674 = vperm.xlu0 %673, %v656
        %v675 = vpop.permute.xlu0 %674
        %678 = vset.pattern.permute.xlu0 0
        %679 = vperm.xlu0 %678, %v657
        %v680 = vpop.permute.xlu0 %679
        %683 = vset.pattern.permute.xlu0 0
        %684 = vperm.xlu0 %683, %v658
        %v685 = vpop.permute.xlu0 %684
        %688 = vset.pattern.permute.xlu0 0
        %689 = vperm.xlu0 %688, %v659
        %v690 = vpop.permute.xlu0 %689
        %693 = vset.pattern.permute.xlu0 0
        %694 = vperm.xlu0 %693, %v660
        %v695 = vpop.permute.xlu0 %694
        %698 = vset.pattern.permute.xlu0 0
        %699 = vperm.xlu0 %698, %v661
        %v700 = vpop.permute.xlu0 %699
        %703 = vset.pattern.permute.xlu0 0
        %704 = vperm.xlu0 %703, %v662
        %v705 = vpop.permute.xlu0 %704
        %708 = vset.pattern.permute.xlu0 0
        %709 = vperm.xlu0 %708, %v663
        %v710 = vpop.permute.xlu0 %709
        %713 = vset.pattern.permute.xlu0 0
        %714 = vperm.xlu0 %713, %v664
        %v715 = vpop.permute.xlu0 %714
        %718 = vset.pattern.permute.xlu0 0
        %719 = vperm.xlu0 %718, %v665
        %v720 = vpop.permute.xlu0 %719
        %723 = vset.pattern.permute.xlu0 0
        %724 = vperm.xlu0 %723, %v666
        %v725 = vpop.permute.xlu0 %724
        %728 = vset.pattern.permute.xlu0 0
        %729 = vperm.xlu0 %728, %v667
        %v730 = vpop.permute.xlu0 %729
        %733 = vset.pattern.permute.xlu0 0
        %734 = vperm.xlu0 %733, %v668
        %v735 = vpop.permute.xlu0 %734
        %738 = vset.pattern.permute.xlu0 0
        %739 = vperm.xlu0 %738, %v669
        %v740 = vpop.permute.xlu0 %739
        %743 = vset.pattern.permute.xlu0 0
        %744 = vperm.xlu0 %743, %v670
        %v745 = vpop.permute.xlu0 %744
        %748 = vset.pattern.permute.xlu0 0
        %749 = vperm.xlu0 %748, %v671
        %v750 = vpop.permute.xlu0 %749
        %752 = vxpose.xlu0.c.b16.start [1/8] %v653, 128
        %753 = vxpose.xlu0.c.b16.cont [2/8] 0, 128
        %754 = vxpose.xlu0.c.b16.cont [3/8] 0, 128
        %755 = vxpose.xlu0.c.b16.cont [4/8] 0, 128
        %756 = vxpose.xlu0.c.b16.cont [5/8] 0, 128
        %757 = vxpose.xlu0.c.b16.cont [6/8] 0, 128
        %758 = vxpose.xlu0.c.b16.cont [7/8] 0, 128
        %759 = vxpose.xlu0.c.b16.end [8/8] 0, 128
        %v760 = vpop.trf.xlu0
        %v761 = vpop.trf.xlu0
        %v762 = vpop.trf.xlu0
        %v763 = vpop.trf.xlu0
        %v764 = vpop.trf.xlu0
        %v765 = vpop.trf.xlu0
        %v766 = vpop.trf.xlu0
        %v767 = vpop.trf.xlu0
        %vm768 = vcmask 130048
        %v770 = vsel %vm768, %v760, 0
        %v773 = vsel %vm768, %v761, 0
        %v776 = vsel %vm768, %v762, 0
        %v779 = vsel %vm768, %v763, 0
        %v782 = vsel %vm768, %v764, 0
        %v785 = vsel %vm768, %v765, 0
        %v788 = vsel %vm768, %v766, 0
        %v791 = vsel %vm768, %v767, 0
        %793 = vmatprep.subr.bf16.mxu0 0
        %794 = vmatpush1.bf16.msra.mxu0 0
        %795 = vmatprep.subr.bf16.mxu0 0
        %796 = vmatpush1.bf16.msra.mxu0 0
        %797 = vmatprep.subr.bf16.mxu0 0
        %798 = vmatpush1.bf16.msra.mxu0 0
        %799 = vmatprep.subr.bf16.mxu0 0
        %800 = vmatpush1.bf16.msra.mxu0 0
        %801 = vmatprep.subr.bf16.mxu0 0
        %802 = vmatpush1.bf16.msra.mxu0 0
        %803 = vmatprep.subr.bf16.mxu0 0
        %804 = vmatpush1.bf16.msra.mxu0 0
        %805 = vmatprep.subr.bf16.mxu0 0
        %806 = vmatpush1.bf16.msra.mxu0 0
        %807 = vmatprep.subr.bf16.mxu0 %v655
        %808 = vmatpush1.bf16.msra.mxu0 %v654
        %809 = vmatprep.subr.bf16.mxu0 0
        %810 = vmatpush2.bf16.msra.mxu0 0
        %811 = vmatprep.subr.bf16.mxu0 0
        %812 = vmatpush2.bf16.msra.mxu0 0
        %813 = vmatprep.subr.bf16.mxu0 0
        %814 = vmatpush2.bf16.msra.mxu0 0
        %815 = vmatprep.subr.bf16.mxu0 0
        %816 = vmatpush2.bf16.msra.mxu0 0
        %817 = vmatprep.subr.bf16.mxu0 0
        %818 = vmatpush2.bf16.msra.mxu0 0
        %819 = vmatprep.subr.bf16.mxu0 0
        %820 = vmatpush2.bf16.msra.mxu0 0
        %821 = vmatprep.subr.bf16.mxu0 0
        %822 = vmatpush2.bf16.msra.mxu0 0
        %823 = vmatprep.subr.bf16.mxu0 0
        %824 = vmatpush2.bf16.msra.mxu0 0
        %825 = vmatprep.mubr.bf16.mxu0 0
        %826 = vmatmul.mubr.bf16.gmra.mxu0 %v770
        %v827 = vpop.f32.mrf.mxu0
        %v828 = vadd.f32 %v675, %v827
        %v829 = vpop.f32.mrf.mxu0
        %v830 = vadd.f32 %v675, %v829
        %v831 = vpop.f32.mrf.mxu0
        %v832 = vadd.f32 %v680, %v831
        %v833 = vpop.f32.mrf.mxu0
        %v834 = vadd.f32 %v680, %v833
        %835 = vmatprep.mubr.bf16.mxu0 0
        %836 = vmatmul.mubr.bf16.gmra.mxu0 %v773
        %v837 = vpop.f32.mrf.mxu0
        %v838 = vadd.f32 %v685, %v837
        %v839 = vpop.f32.mrf.mxu0
        %v840 = vadd.f32 %v685, %v839
        %v841 = vpop.f32.mrf.mxu0
        %v842 = vadd.f32 %v690, %v841
        %v843 = vpop.f32.mrf.mxu0
        %v844 = vadd.f32 %v690, %v843
        %845 = vmatprep.mubr.bf16.mxu0 0
        %846 = vmatmul.mubr.bf16.gmra.mxu0 %v776
        %v847 = vpop.f32.mrf.mxu0
        %v848 = vadd.f32 %v695, %v847
        %v849 = vpop.f32.mrf.mxu0
        %v850 = vadd.f32 %v695, %v849
        %v851 = vpop.f32.mrf.mxu0
        %v852 = vadd.f32 %v700, %v851
        %v853 = vpop.f32.mrf.mxu0
        %v854 = vadd.f32 %v700, %v853
        %855 = vmatprep.mubr.bf16.mxu0 0
        %856 = vmatmul.mubr.bf16.gmra.mxu0 %v779
        %v857 = vpop.f32.mrf.mxu0
        %v858 = vadd.f32 %v705, %v857
        %v859 = vpop.f32.mrf.mxu0
        %v860 = vadd.f32 %v705, %v859
        %v861 = vpop.f32.mrf.mxu0
        %v862 = vadd.f32 %v710, %v861
        %v863 = vpop.f32.mrf.mxu0
        %v864 = vadd.f32 %v710, %v863
        %865 = vmatprep.mubr.bf16.mxu0 0
        %866 = vmatmul.mubr.bf16.gmra.mxu0 %v782
        %v867 = vpop.f32.mrf.mxu0
        %v868 = vadd.f32 %v715, %v867
        %v869 = vpop.f32.mrf.mxu0
        %v870 = vadd.f32 %v715, %v869
        %v871 = vpop.f32.mrf.mxu0
        %v872 = vadd.f32 %v720, %v871
        %v873 = vpop.f32.mrf.mxu0
        %v874 = vadd.f32 %v720, %v873
        %875 = vmatprep.mubr.bf16.mxu0 0
        %876 = vmatmul.mubr.bf16.gmra.mxu0 %v785
        %v877 = vpop.f32.mrf.mxu0
        %v878 = vadd.f32 %v725, %v877
        %v879 = vpop.f32.mrf.mxu0
        %v880 = vadd.f32 %v725, %v879
        %v881 = vpop.f32.mrf.mxu0
        %v882 = vadd.f32 %v730, %v881
        %v883 = vpop.f32.mrf.mxu0
        %v884 = vadd.f32 %v730, %v883
        %885 = vmatprep.mubr.bf16.mxu0 0
        %886 = vmatmul.mubr.bf16.gmra.mxu0 %v788
        %v887 = vpop.f32.mrf.mxu0
        %v888 = vadd.f32 %v735, %v887
        %v889 = vpop.f32.mrf.mxu0
        %v890 = vadd.f32 %v735, %v889
        %v891 = vpop.f32.mrf.mxu0
        %v892 = vadd.f32 %v740, %v891
        %v893 = vpop.f32.mrf.mxu0
        %v894 = vadd.f32 %v740, %v893
        %895 = vmatprep.mubr.bf16.mxu0 0
        %896 = vmatmul.mubr.bf16.gmra.mxu0 %v791
        %v897 = vpop.f32.mrf.mxu0
        %v898 = vadd.f32 %v745, %v897
        %v899 = vpop.f32.mrf.mxu0
        %v900 = vadd.f32 %v745, %v899
        %v901 = vpop.f32.mrf.mxu0
        %v902 = vadd.f32 %v750, %v901
        %v903 = vpop.f32.mrf.mxu0
        %v904 = vadd.f32 %v750, %v903
        %905 = vdwg.mxu0
        %v906 = vmax.f32 %v828, %v838
        %v907 = vmax.f32 %v832, %v842
        %v908 = vmax.f32 %v906, %v848
        %v909 = vmax.f32 %v907, %v852
        %v910 = vmax.f32 %v908, %v858
        %v911 = vmax.f32 %v909, %v862
        %v912 = vmax.f32 %v910, %v868
        %v913 = vmax.f32 %v911, %v872
        %v914 = vmax.f32 %v912, %v878
        %v915 = vmax.f32 %v913, %v882
        %v916 = vmax.f32 %v914, %v888
        %v917 = vmax.f32 %v915, %v892
        %v918 = vmax.f32 %v916, %v898
        %v919 = vmax.f32 %v917, %v902
        %v920 = vmax.f32 %v918, %v919
        %v921 = vrot.slane %v920, 4
        %v922 = vmax.f32 %v920, %v921
        %v923 = vrot.slane %v922, 2
        %v924 = vmax.f32 %v922, %v923
        %v925 = vrot.slane %v924, 1
        %v926 = vmax.f32 %v924, %v925
        %v927 = vmax.f32 %v830, %v840
        %v928 = vmax.f32 %v834, %v844
        %v929 = vmax.f32 %v927, %v850
        %v930 = vmax.f32 %v928, %v854
        %v931 = vmax.f32 %v929, %v860
        %v932 = vmax.f32 %v930, %v864
        %v933 = vmax.f32 %v931, %v870
        %v934 = vmax.f32 %v932, %v874
        %v935 = vmax.f32 %v933, %v880
        %v936 = vmax.f32 %v934, %v884
        %v937 = vmax.f32 %v935, %v890
        %v938 = vmax.f32 %v936, %v894
        %v939 = vmax.f32 %v937, %v900
        %v940 = vmax.f32 %v938, %v904
        %v941 = vmax.f32 %v939, %v940
        %v942 = vrot.slane %v941, 4
        %v943 = vmax.f32 %v941, %v942
        %v944 = vrot.slane %v943, 2
        %v945 = vmax.f32 %v943, %v944
        %v946 = vrot.slane %v945, 1
        %v947 = vmax.f32 %v945, %v946
        %v948 = vsub.f32 %v828, %v926
        %v949 = vsub.f32 %v830, %v947
        %v950 = vsub.f32 %v832, %v926
        %v951 = vsub.f32 %v834, %v947
        %v952 = vsub.f32 %v838, %v926
        %v953 = vsub.f32 %v840, %v947
        %v954 = vsub.f32 %v842, %v926
        %v955 = vsub.f32 %v844, %v947
        %v956 = vsub.f32 %v848, %v926
        %v957 = vsub.f32 %v850, %v947
        %v958 = vsub.f32 %v852, %v926
        %v959 = vsub.f32 %v854, %v947
        %v960 = vsub.f32 %v858, %v926
        %v961 = vsub.f32 %v860, %v947
        %v962 = vsub.f32 %v862, %v926
        %v963 = vsub.f32 %v864, %v947
        %v964 = vsub.f32 %v868, %v926
        %v965 = vsub.f32 %v870, %v947
        %v966 = vsub.f32 %v872, %v926
        %v967 = vsub.f32 %v874, %v947
        %v968 = vsub.f32 %v878, %v926
        %v969 = vsub.f32 %v880, %v947
        %v970 = vsub.f32 %v882, %v926
        %v971 = vsub.f32 %v884, %v947
        %v972 = vsub.f32 %v888, %v926
        %v973 = vsub.f32 %v890, %v947
        %v974 = vsub.f32 %v892, %v926
        %v975 = vsub.f32 %v894, %v947
        %v976 = vsub.f32 %v898, %v926
        %v977 = vsub.f32 %v900, %v947
        %v978 = vsub.f32 %v902, %v926
        %v979 = vsub.f32 %v904, %v947
        %v980 = vmul.f32 %v948, 1.442695
        %v981 = vpow.pop %v980
        %v982 = vmul.f32 %v949, 1.442695
        %v983 = vpow.pop %v982
        %v984 = vmul.f32 %v950, 1.442695
        %v985 = vpow.pop %v984
        %v986 = vmul.f32 %v951, 1.442695
        %v987 = vpow.pop %v986
        %v988 = vmul.f32 %v952, 1.442695
        %v989 = vpow.pop %v988
        %v990 = vmul.f32 %v953, 1.442695
        %v991 = vpow.pop %v990
        %v992 = vmul.f32 %v954, 1.442695
        %v993 = vpow.pop %v992
        %v994 = vmul.f32 %v955, 1.442695
        %v995 = vpow.pop %v994
        %v996 = vmul.f32 %v956, 1.442695
        %v997 = vpow.pop %v996
        %v998 = vmul.f32 %v957, 1.442695
        %v999 = vpow.pop %v998
        %v1000 = vmul.f32 %v958, 1.442695
        %v1001 = vpow.pop %v1000
        %v1002 = vmul.f32 %v959, 1.442695
        %v1003 = vpow.pop %v1002
        %v1004 = vmul.f32 %v960, 1.442695
        %v1005 = vpow.pop %v1004
        %v1006 = vmul.f32 %v961, 1.442695
        %v1007 = vpow.pop %v1006
        %v1008 = vmul.f32 %v962, 1.442695
        %v1009 = vpow.pop %v1008
        %v1010 = vmul.f32 %v963, 1.442695
        %v1011 = vpow.pop %v1010
        %v1012 = vmul.f32 %v964, 1.442695
        %v1013 = vpow.pop %v1012
        %v1014 = vmul.f32 %v965, 1.442695
        %v1015 = vpow.pop %v1014
        %v1016 = vmul.f32 %v966, 1.442695
        %v1017 = vpow.pop %v1016
        %v1018 = vmul.f32 %v967, 1.442695
        %v1019 = vpow.pop %v1018
        %v1020 = vmul.f32 %v968, 1.442695
        %v1021 = vpow.pop %v1020
        %v1022 = vmul.f32 %v969, 1.442695
        %v1023 = vpow.pop %v1022
        %v1024 = vmul.f32 %v970, 1.442695
        %v1025 = vpow.pop %v1024
        %v1026 = vmul.f32 %v971, 1.442695
        %v1027 = vpow.pop %v1026
        %v1028 = vmul.f32 %v972, 1.442695
        %v1029 = vpow.pop %v1028
        %v1030 = vmul.f32 %v973, 1.442695
        %v1031 = vpow.pop %v1030
        %v1032 = vmul.f32 %v974, 1.442695
        %v1033 = vpow.pop %v1032
        %v1034 = vmul.f32 %v975, 1.442695
        %v1035 = vpow.pop %v1034
        %v1036 = vmul.f32 %v976, 1.442695
        %v1037 = vpow.pop %v1036
        %v1038 = vmul.f32 %v977, 1.442695
        %v1039 = vpow.pop %v1038
        %v1040 = vmul.f32 %v978, 1.442695
        %v1041 = vpow.pop %v1040
        %v1042 = vmul.f32 %v979, 1.442695
        %v1043 = vpow.pop %v1042
        %v1044 = vadd.f32 %v981, %v985
        %v1045 = vadd.f32 %v1044, %v989
        %v1046 = vadd.f32 %v1045, %v993
        %v1047 = vadd.f32 %v1046, %v997
        %v1048 = vadd.f32 %v1047, %v1001
        %v1049 = vadd.f32 %v1048, %v1005
        %v1050 = vadd.f32 %v1049, %v1009
        %v1051 = vadd.f32 %v1050, %v1013
        %v1052 = vadd.f32 %v1051, %v1017
        %v1053 = vadd.f32 %v1052, %v1021
        %v1054 = vadd.f32 %v1053, %v1025
        %v1055 = vadd.f32 %v1054, %v1029
        %v1056 = vadd.f32 %v1055, %v1033
        %v1057 = vadd.f32 %v1056, %v1037
        %v1058 = vadd.f32 %v1057, %v1041
        %v1059 = vrot.slane %v1058, 4
        %v1060 = vadd.f32 %v1058, %v1059
        %v1061 = vrot.slane %v1060, 2
        %v1062 = vadd.f32 %v1060, %v1061
        %v1063 = vrot.slane %v1062, 1
        %v1064 = vadd.f32 %v1062, %v1063
        %v1065 = vadd.f32 %v983, %v987
        %v1066 = vadd.f32 %v1065, %v991
        %v1067 = vadd.f32 %v1066, %v995
        %v1068 = vadd.f32 %v1067, %v999
        %v1069 = vadd.f32 %v1068, %v1003
        %v1070 = vadd.f32 %v1069, %v1007
        %v1071 = vadd.f32 %v1070, %v1011
        %v1072 = vadd.f32 %v1071, %v1015
        %v1073 = vadd.f32 %v1072, %v1019
        %v1074 = vadd.f32 %v1073, %v1023
        %v1075 = vadd.f32 %v1074, %v1027
        %v1076 = vadd.f32 %v1075, %v1031
        %v1077 = vadd.f32 %v1076, %v1035
        %v1078 = vadd.f32 %v1077, %v1039
        %v1079 = vadd.f32 %v1078, %v1043
        %v1080 = vrot.slane %v1079, 4
        %v1081 = vadd.f32 %v1079, %v1080
        %v1082 = vrot.slane %v1081, 2
        %v1083 = vadd.f32 %v1081, %v1082
        %v1084 = vrot.slane %v1083, 1
        %v1085 = vadd.f32 %v1083, %v1084
        %v1086 = vrcp.pop %v1064
        %v1087 = vrcp.pop %v1085
        %v1088 = vmul.f32 %v981, %v1086
        %v1089 = vmul.f32 %v983, %v1087
        %v1090 = vmul.f32 %v985, %v1086
        %v1091 = vmul.f32 %v987, %v1087
        %v1092 = vmul.f32 %v989, %v1086
        %v1093 = vmul.f32 %v991, %v1087
        %v1094 = vmul.f32 %v993, %v1086
        %v1095 = vmul.f32 %v995, %v1087
        %v1096 = vmul.f32 %v997, %v1086
        %v1097 = vmul.f32 %v999, %v1087
        %v1098 = vmul.f32 %v1001, %v1086
        %v1099 = vmul.f32 %v1003, %v1087
        %v1100 = vmul.f32 %v1005, %v1086
        %v1101 = vmul.f32 %v1007, %v1087
        %v1102 = vmul.f32 %v1009, %v1086
        %v1103 = vmul.f32 %v1011, %v1087
        %v1104 = vmul.f32 %v1013, %v1086
        %v1105 = vmul.f32 %v1015, %v1087
        %v1106 = vmul.f32 %v1017, %v1086
        %v1107 = vmul.f32 %v1019, %v1087
        %v1108 = vmul.f32 %v1021, %v1086
        %v1109 = vmul.f32 %v1023, %v1087
        %v1110 = vmul.f32 %v1025, %v1086
        %v1111 = vmul.f32 %v1027, %v1087
        %v1112 = vmul.f32 %v1029, %v1086
        %v1113 = vmul.f32 %v1031, %v1087
        %v1114 = vmul.f32 %v1033, %v1086
        %v1115 = vmul.f32 %v1035, %v1087
        %v1116 = vmul.f32 %v1037, %v1086
        %v1117 = vmul.f32 %v1039, %v1087
        %v1118 = vmul.f32 %v1041, %v1086
        %v1119 = vmul.f32 %v1043, %v1087
        %v1120 = vpack.c.bf16 %v650, %v647
        %v1121 = vpack.c.bf16 %v1090, %v1088
        %v1122 = vpack.c.bf16 %v1091, %v1089
        %v1123 = vpack.c.bf16 %v1094, %v1092
        %v1124 = vpack.c.bf16 %v1095, %v1093
        %v1125 = vpack.c.bf16 %v1098, %v1096
        %v1126 = vpack.c.bf16 %v1099, %v1097
        %v1127 = vpack.c.bf16 %v1102, %v1100
        %v1128 = vpack.c.bf16 %v1103, %v1101
        %v1129 = vpack.c.bf16 %v1106, %v1104
        %v1130 = vpack.c.bf16 %v1107, %v1105
        %v1131 = vpack.c.bf16 %v1110, %v1108
        %v1132 = vpack.c.bf16 %v1111, %v1109
        %v1133 = vpack.c.bf16 %v1114, %v1112
        %v1134 = vpack.c.bf16 %v1115, %v1113
        %v1135 = vpack.c.bf16 %v1118, %v1116
        %v1136 = vpack.c.bf16 %v1119, %v1117
        %1137 = vmatprep.subr.bf16.mxu0 %v1136
        %1138 = vmatpush1.bf16.msra.mxu0 %v1135
        %1139 = vmatprep.subr.bf16.mxu0 %v1134
        %1140 = vmatpush1.bf16.msra.mxu0 %v1133
        %1141 = vmatprep.subr.bf16.mxu0 %v1132
        %1142 = vmatpush1.bf16.msra.mxu0 %v1131
        %1143 = vmatprep.subr.bf16.mxu0 %v1130
        %1144 = vmatpush1.bf16.msra.mxu0 %v1129
        %1145 = vmatprep.subr.bf16.mxu0 %v1128
        %1146 = vmatpush1.bf16.msra.mxu0 %v1127
        %1147 = vmatprep.subr.bf16.mxu0 %v1126
        %1148 = vmatpush1.bf16.msra.mxu0 %v1125
        %1149 = vmatprep.subr.bf16.mxu0 %v1124
        %1150 = vmatpush1.bf16.msra.mxu0 %v1123
        %1151 = vmatprep.subr.bf16.mxu0 %v1122
        %1152 = vmatpush1.bf16.msra.mxu0 %v1121
        %1153 = vmatprep.subr.bf16.mxu0 0
        %1154 = vmatpush2.bf16.msra.mxu0 0
        %1155 = vmatprep.subr.bf16.mxu0 0
        %1156 = vmatpush2.bf16.msra.mxu0 0
        %1157 = vmatprep.subr.bf16.mxu0 0
        %1158 = vmatpush2.bf16.msra.mxu0 0
        %1159 = vmatprep.subr.bf16.mxu0 0
        %1160 = vmatpush2.bf16.msra.mxu0 0
        %1161 = vmatprep.subr.bf16.mxu0 0
        %1162 = vmatpush2.bf16.msra.mxu0 0
        %1163 = vmatprep.subr.bf16.mxu0 0
        %1164 = vmatpush2.bf16.msra.mxu0 0
        %1165 = vmatprep.subr.bf16.mxu0 0
        %1166 = vmatpush2.bf16.msra.mxu0 0
        %1167 = vmatprep.subr.bf16.mxu0 0
        %1168 = vmatpush2.bf16.msra.mxu0 0
        %1169 = vmatprep.mubr.bf16.mxu0 0
        %1170 = vmatmul.mubr.bf16.gmra.mxu0 %v1120
        %v1171 = vpop.f32.mrf.mxu0
        %v1172 = vadd.f32 0.0, %v1171
        %v1173 = vpop.f32.mrf.mxu0
        %v1174 = vadd.f32 0.0, %v1173
        %v1175 = vpop.f32.mrf.mxu0
        %v1176 = vadd.f32 0.0, %v1175
        %v1177 = vpop.f32.mrf.mxu0
        %v1178 = vadd.f32 0.0, %v1177
        %1179 = vdwg.mxu0
        %v1180 = vld [vmem:[%s5] sm:$0xf]
        %v1181 = vld [vmem:[%s5 + $0x4] sm:$0xf]
        %v1182 = vpack.c.bf16 %v1176, %v1172
        %v1183 = vpack.c.bf16 %v1178, %v1174
        %v1186 = vunpack.c.l.b16 %v1180
        %v1187 = vunpack.c.l.b16 %v1181
        %v1188 = vpack.c.b16 %v1187, %v1186
        %v1190 = vsel %vm768, %v1188, 0
        %1192 = vmatprep.subr.bf16.mxu0 0
        %1193 = vmatpush1.bf16.msra.mxu0 0
        %1194 = vmatprep.subr.bf16.mxu0 0
        %1195 = vmatpush1.bf16.msra.mxu0 0
        %1196 = vmatprep.subr.bf16.mxu0 0
        %1197 = vmatpush1.bf16.msra.mxu0 0
        %1198 = vmatprep.subr.bf16.mxu0 0
        %1199 = vmatpush1.bf16.msra.mxu0 0
        %1200 = vmatprep.subr.bf16.mxu0 0
        %1201 = vmatpush1.bf16.msra.mxu0 0
        %1202 = vmatprep.subr.bf16.mxu0 0
        %1203 = vmatpush1.bf16.msra.mxu0 0
        %1204 = vmatprep.subr.bf16.mxu0 0
        %1205 = vmatpush1.bf16.msra.mxu0 0
        %1206 = vmatprep.subr.bf16.mxu0 %v1183
        %1207 = vmatpush1.bf16.msra.mxu0 %v1182
        %1208 = vmatprep.subr.bf16.mxu0 0
        %1209 = vmatpush2.bf16.msra.mxu0 0
        %1210 = vmatprep.subr.bf16.mxu0 0
        %1211 = vmatpush2.bf16.msra.mxu0 0
        %1212 = vmatprep.subr.bf16.mxu0 0
        %1213 = vmatpush2.bf16.msra.mxu0 0
        %1214 = vmatprep.subr.bf16.mxu0 0
        %1215 = vmatpush2.bf16.msra.mxu0 0
        %1216 = vmatprep.subr.bf16.mxu0 0
        %1217 = vmatpush2.bf16.msra.mxu0 0
        %1218 = vmatprep.subr.bf16.mxu0 0
        %1219 = vmatpush2.bf16.msra.mxu0 0
        %1220 = vmatprep.subr.bf16.mxu0 0
        %1221 = vmatpush2.bf16.msra.mxu0 0
        %1222 = vmatprep.subr.bf16.mxu0 0
        %1223 = vmatpush2.bf16.msra.mxu0 0
        %1224 = vmatprep.mubr.bf16.mxu0 0
        %1225 = vmatmul.mubr.bf16.gmra.mxu0 %v1190
        %v1226 = vpop.f32.mrf.mxu0
        %v1227 = vadd.f32 %v445, %v1226
        %v1228 = vpop.f32.mrf.mxu0
        %v1229 = vadd.f32 %v447, %v1228
        %v1230 = vpop.f32.mrf.mxu0
        %v1231 = vadd.f32 %v449, %v1230
        %v1232 = vpop.f32.mrf.mxu0
        %v1233 = vadd.f32 %v451, %v1232
        %1234 = vdwg.mxu0
        %v1235 = vpack.c.bf16 %v1231, %v1227
        %v1236 = vpack.c.bf16 %v1233, %v1229
        %v1239 = vunpack.c.l.b16 %v1235
        %v1240 = vunpack.c.l.b16 %v1236
        %v1241 = vunpack.c.h.b16 %v1235
        %v1242 = vunpack.c.h.b16 %v1236
        %v1243 = vpack.c.b16 %v1240, %v1239
        %v1244 = vpack.c.b16 %v1242, %v1241
        %1247 = vst [vmem:[%s313] sm:$0xff] %v1243
        %1248 = vst [vmem:[%s313 + $0x8] sm:$0xff] %v1244
        %s1249 = sand.u32 %s208, 1
        %s1250 = scalar_lea.sflag [#allocation3], %s1249
        %s1251 = sand.u32 %s208, 1
        %s1252 = smul.addr %s1251, 16
        %s1253 = scalar_lea.vmem [#allocation2], %s1252
        // Predicated region
        $region53: #{tpu_custom_call.1} parent=51 // pred_check
          %p1254 = pneg %p218
        $region54: #{tpu_custom_call.1} parent=51 // pred_check_branch
          %1256 = sbr.rel (%p1254) target = $region56
        $region55: #{tpu_custom_call.1} parent=51 // pred_region
          %s1258 = ssub.s32 256, 256
          %1259 = vsyncadd %s1250, %s1258
          %s1260 = smul.addr %s22, 4
          %s1261 = smul.addr %s1260, 64
          %s1262 = scalar_lea.hbm %s8, %s1261
          %s1263 = sshll.u32 %s1253, 4
          %s1264 = int_to_ptr.vmem [resolvable:$true] %s1263
          %1269 = dma.vmem_to_hbm [thread:$0]  %s1264, 256, %s1262, %s1250, 128, 128, 8
        $region56: #{tpu_custom_call.1} parent=51 // pred_fallthru
          _
      $region52: #{tpu_custom_call.1} parent=5 // pred_fallthru
        _
      %p1270 = scmp.le.s32.totalorder 2, %s17
      // Predicated region
      $region57: #{tpu_custom_call.1} parent=5 // pred_check
        %p1271 = pneg %p1270
      $region58: #{tpu_custom_call.1} parent=5 // pred_check_branch
        %1273 = sbr.rel (%p1271) target = $region60
      $region59: #{tpu_custom_call.1} parent=5 // pred_region
        %s1274 = ssub.s32 %s17, 2
        // Predicated region
        $region61: #{tpu_custom_call.1} parent=59 // pred_check
          %p1275 = pneg %p224
        $region62: #{tpu_custom_call.1} parent=59 // pred_check_branch
          %1277 = sbr.rel (%p1275) target = $region64
        $region63: #{tpu_custom_call.1} parent=59 // pred_region
          %s1278 = sand.u32 %s209, 1
          %s1279 = scalar_lea.sflag [#allocation3], %s1278
          %s1280 = sand.u32 %s209, 1
          %s1281 = smul.addr %s1280, 16
          %s1282 = scalar_lea.vmem [#allocation2], %s1281
          %1283 = dma.done %s1279, 256
        $region64: #{tpu_custom_call.1} parent=59 // pred_fallthru
          _
      $region60: #{tpu_custom_call.1} parent=5 // pred_fallthru
        _
    $region6: #{tpu_custom_call.1} parent=1 // loop_footer
      %s21 = sadd.s32 1, %s17
    $region7: #{tpu_custom_call.1} parent=1 // loop_footer_branch
      %16 = sbr.rel target = $region3
    $region8: #{tpu_custom_call.1} parent=1 // loop_exit
      _
    %1284 = vsyncpa [#allocation3], 1
    %s1285 = scalar_lea.sflag [#allocation3], 1
    %1286 = vsyncpa %s1285, 1

</llo_original>
